<compile_context>
chip_gen: v5e
topology: v5e:2x2
jax: 0.10.0
libtpu: 0.0.40
codegen_flags: <defaults>
</compile_context>

<pallas_src>
import jax
import jax.numpy as jnp
from jax.experimental import pallas as pl
from jax.experimental.pallas import tpu as pltpu


def users_sets_encoder_kernel(members_ref, neigh_ref,
                              w1_ref, b1_ref, w2_ref, b2_ref,
                              gsum_ref, expand_ref,
                              w_self_ref, w_neigh_ref, b_lin_ref,
                              out_ref):
    """One grid step = T packed rows (= T * F original users).

    Lane layout (F users folded per packed row, K = F*G members):
      members_ref : [T, K*E]  bf16   lane (j*G+g)*E + e = member g of user j
      neigh_ref   : [T, F*E]  bf16   lane j*E + e       = neigh feats of user j
      out_ref     : [T, F*E]  f32    lane j*E + c       = output of user j
    Weights are packed block-diagonally on the host, so everything below is a
    plain 2D lane-dense matmul / VPU op (no 3D tiles, reshapes or concats).
    """
    m = members_ref[...]                                       # [T, K*E] bf16

    # Group_Embedding attention MLP for every member of every user at once.
    h = jnp.dot(m, w1_ref[...], preferred_element_type=jnp.float32)
    h = jnp.maximum(h + b1_ref[...], 0.0)                      # [T, K*H] f32
    scores = jnp.dot(h, w2_ref[...], preferred_element_type=jnp.float32)
    scores = scores + b2_ref[...]                              # [T, K]

    # Per-user softmax over the G members.  Subtracting the packed-row max is
    # a constant shift inside every user's G-lane group, so the per-user
    # softmax is mathematically unchanged while staying numerically stable.
    scores = scores - jnp.max(scores, axis=-1, keepdims=True)
    e = jnp.exp(scores)                                        # [T, K] f32
    denom = jnp.dot(e, gsum_ref[...],                          # group sums,
                    preferred_element_type=jnp.float32)        # broadcast back
    att = e / denom                                            # [T, K]

    # Attention-weighted sum of the member embeddings (self_feats), then the
    # fused relu(linear1(cat([self, neigh]))).  The per-user lane placement of
    # the output is folded into the packed weights, so no concat is needed.
    att_lanes = jnp.dot(att, expand_ref[...],
                        preferred_element_type=jnp.float32)    # [T, K*E]
    wm = att_lanes * m.astype(jnp.float32)                     # weighted members
    out = jnp.dot(wm, w_self_ref[...], preferred_element_type=jnp.float32)
    out = out + jnp.dot(neigh_ref[...], w_neigh_ref[...],
                        preferred_element_type=jnp.float32)
    out = out + b_lin_ref[...]
    out_ref[...] = jnp.maximum(out, 0.0)                       # [T, F*E] f32


def _pack_weights(params, E, G, H, F):
    """Build block-diagonal / placement weights so the kernel is pure 2D."""
    K = F * G
    f32 = jnp.float32
    eye_k = jnp.eye(K, dtype=f32)
    eye_f = jnp.eye(F, dtype=f32)
    w1 = params["ge_w1"].astype(f32)                 # [E, H]
    w2 = params["ge_w2"].reshape(H, 1).astype(f32)   # [H, 1]
    w_self = params["w_self"].astype(f32)            # [E, E]
    w_neigh = params["w_neigh"].astype(f32)          # [E, E]
    return dict(
        # attention MLP applied to all K members at once (block-diagonal)
        w1b=jnp.kron(eye_k, w1).astype(jnp.bfloat16),             # [K*E, K*H]
        b1b=jnp.tile(params["ge_b1"].reshape(1, H), (1, K)),      # [1, K*H]
        w2b=jnp.kron(eye_k, w2),                                  # [K*H, K]
        b2b=params["ge_b2"].reshape(1, 1).astype(f32),            # [1, 1]
        # 0/1 helpers: per-user group sums and att -> lane expansion
        gsum=jnp.kron(eye_f, jnp.ones((G, G), f32)),              # [K, K]
        expand=jnp.kron(eye_k, jnp.ones((1, E), f32)),            # [K, K*E]
        # linear1 split into self / neigh halves, placed per folded user
        w_self_big=jnp.kron(eye_f,
                            jnp.kron(jnp.ones((G, 1), f32), w_self)),  # [K*E, F*E]
        w_neigh_big=jnp.kron(eye_f, w_neigh).astype(jnp.bfloat16),     # [F*E, F*E]
        b_lin_big=jnp.tile(params["b_lin1"].reshape(1, E), (1, F)),    # [1, F*E]
    )


def users_sets_encoder(nodes, features_weight, neigh_feats, params,
                       *, tile_users=1024):
    """nodes: [N, G] int32 member indices per user-set."""
    N, G = nodes.shape
    E = features_weight.shape[1]
    H = params["ge_w1"].shape[1]
    # Fold F consecutive users onto the 128-wide lane axis.
    F = 128 // E if (E <= 128 and 128 % E == 0) else 1
    K = F * G

    # Glue: embedding gather (features.weight[nodes]); streamed as bf16.
    members = jnp.take(features_weight, nodes, axis=0).astype(jnp.bfloat16)
    neigh = neigh_feats.astype(jnp.bfloat16)

    # Packed rows per grid step.  Sized against v7x's 32 MiB scoped VMEM:
    # double-buffered streams per step ~ 2*(T*K*E*2 + T*F*E*2 + T*F*E*4)
    # ~= 0.9 MiB at T=256, E=32, plus ~1.2 MiB of resident packed weights.
    rows_needed = -(-N // F)
    tile = max(8, ((tile_users // F) // 8) * 8)
    if rows_needed <= tile:
        tile = rows_needed               # single step; block == full dim
        rows = rows_needed
    else:
        rows = -(-rows_needed // tile) * tile
    n_pad = rows * F
    if n_pad != N:
        members = jnp.pad(members, ((0, n_pad - N), (0, 0), (0, 0)))
        neigh = jnp.pad(neigh, ((0, n_pad - N), (0, 0)))

    # Free row-major re-views: [N, G, E] -> [rows, K*E], [N, E] -> [rows, F*E].
    members_p = members.reshape(rows, K * E)
    neigh_p = neigh.reshape(rows, F * E)

    pw = _pack_weights(params, E, G, H, F)
    weight_order = ("w1b", "b1b", "w2b", "b2b", "gsum", "expand",
                    "w_self_big", "w_neigh_big", "b_lin_big")
    weights = [pw[k] for k in weight_order]

    def stream_spec(lanes):
        return pl.BlockSpec((tile, lanes), lambda i: (i, 0))

    def resident_spec(arr):              # same block every step -> stays in VMEM
        return pl.BlockSpec(arr.shape, lambda i: (0, 0))

    out_p = pl.pallas_call(
        users_sets_encoder_kernel,
        out_shape=jax.ShapeDtypeStruct((rows, F * E), jnp.float32),
        grid=(rows // tile,),
        in_specs=[stream_spec(K * E), stream_spec(F * E)]
                 + [resident_spec(w) for w in weights],
        out_specs=stream_spec(F * E),
        compiler_params=pltpu.CompilerParams(
            dimension_semantics=("parallel",),     # row-parallel -> megacore
            vmem_limit_bytes=32 * 1024 * 1024),
    )(members_p, neigh_p, *weights)

    return out_p.reshape(n_pad, E)[:N]


def init_params(key, embed_dim=32, att_hidden=16):
    E, H = embed_dim, att_hidden
    ks = jax.random.split(key, 3)
    # Group_Embedding attention weights (stand-in, see TODO above)
    ge_w1 = jax.random.normal(ks[0], (E, H), jnp.float32) / jnp.sqrt(E)
    ge_b1 = jnp.zeros((1, H), jnp.float32)
    ge_w2 = jax.random.normal(ks[1], (1, H), jnp.float32) / jnp.sqrt(H)
    ge_b2 = jnp.zeros((1, 1), jnp.float32)
    # linear1 = nn.Linear(2*E, E): stored transposed [2E, E], split self/neigh.
    w_lin1 = jax.random.normal(ks[2], (2 * E, E), jnp.float32) / jnp.sqrt(2 * E)
    b_lin1 = jnp.zeros((1, E), jnp.float32)
    return dict(ge_w1=ge_w1, ge_b1=ge_b1, ge_w2=ge_w2, ge_b2=ge_b2,
                w_self=w_lin1[:E], w_neigh=w_lin1[E:], b_lin1=b_lin1)


def reference(nodes, features_weight, neigh_feats, p):
    """Pure-JAX reference with the same bf16-streamed inputs, f32 math."""
    members = jnp.take(features_weight, nodes, axis=0).astype(jnp.bfloat16)
    neigh = neigh_feats.astype(jnp.bfloat16)
    h = jnp.dot(members, p["ge_w1"].astype(jnp.bfloat16),
                preferred_element_type=jnp.float32)
    h = jnp.maximum(h + p["ge_b1"][0], 0.0)                       # [N, G, H]
    scores = jnp.einsum("ngh,h->ng", h, p["ge_w2"][0]) + p["ge_b2"][0, 0]
    att = jax.nn.softmax(scores, axis=-1)                         # [N, G]
    user_p = jnp.einsum("ng,nge->ne", att, members.astype(jnp.float32))
    out = (user_p @ p["w_self"]
           + jnp.dot(neigh, p["w_neigh"].astype(jnp.bfloat16),
                     preferred_element_type=jnp.float32)
           + p["b_lin1"][0])
    return jnp.maximum(out, 0.0)


if __name__ == "__main__":
    key = jax.random.PRNGKey(0)
    k_feat, k_nodes, k_neigh, k_param = jax.random.split(key, 4)

    num_users, E, N, G, H = 64, 32, 8, 4, 16
    features_weight = jax.random.normal(k_feat, (num_users, E), jnp.float32)
    nodes = jax.random.randint(k_nodes, (N, G), 0, num_users, dtype=jnp.int32)
    neigh_feats = jax.random.normal(k_neigh, (N, E), jnp.float32)
    params = init_params(k_param, embed_dim=E, att_hidden=H)

    out = users_sets_encoder(nodes, features_weight, neigh_feats, params)
    out = jax.block_until_ready(out)

    ref = reference(nodes, features_weight, neigh_feats, params)
    assert out.shape == (N, E), out.shape
    assert out.dtype == jnp.float32, out.dtype
    # bf16-streamed inputs + block-packed (re-associated) contractions: allow
    # bf16-level slack; TPU default f32 matmul precision is bf16-pass based,
    # so the kernel and the unpacked XLA reference may differ at ~1e-2 worst.
    assert jnp.allclose(out, ref, atol=2e-2, rtol=2e-2), \
        float(jnp.max(jnp.abs(out - ref)))
    print("KERNEL_OK")
</pallas_src>

<mosaic_0001>
module attributes {stable_mosaic.version = 11 : i64} {
  func.func @users_sets_encoder_kernel(%arg0: i32, %arg1: memref<2x512xbf16, #tpu.memory_space<vmem>>, %arg2: memref<2x128xbf16, #tpu.memory_space<vmem>>, %arg3: memref<512x256xbf16, #tpu.memory_space<vmem>>, %arg4: memref<1x256xf32, #tpu.memory_space<vmem>>, %arg5: memref<256x16xf32, #tpu.memory_space<vmem>>, %arg6: memref<1x1xf32, #tpu.memory_space<vmem>>, %arg7: memref<16x16xf32, #tpu.memory_space<vmem>>, %arg8: memref<16x512xf32, #tpu.memory_space<vmem>>, %arg9: memref<512x128xf32, #tpu.memory_space<vmem>>, %arg10: memref<128x128xbf16, #tpu.memory_space<vmem>>, %arg11: memref<1x128xf32, #tpu.memory_space<vmem>>, %arg12: memref<2x128xf32, #tpu.memory_space<vmem>>) attributes {dimension_semantics = [#tpu.dimension_semantics<parallel>], iteration_bounds = array<i64: 1>, scalar_prefetch = 0 : i64, scratch_operands = 0 : i64, tpu.core_type = #tpu.core_type<tc>, window_params = [{transform_indices = @transform_0, window_bounds = array<i64: 2, 512>}, {transform_indices = @transform_1, window_bounds = array<i64: 2, 128>}, {pipeline_mode = #tpu.pipeline_mode<synchronous>, transform_indices = @transform_2, window_bounds = array<i64: 512, 256>}, {pipeline_mode = #tpu.pipeline_mode<synchronous>, transform_indices = @transform_3, window_bounds = array<i64: 1, 256>}, {pipeline_mode = #tpu.pipeline_mode<synchronous>, transform_indices = @transform_4, window_bounds = array<i64: 256, 16>}, {pipeline_mode = #tpu.pipeline_mode<synchronous>, transform_indices = @transform_5, window_bounds = array<i64: 1, 1>}, {pipeline_mode = #tpu.pipeline_mode<synchronous>, transform_indices = @transform_6, window_bounds = array<i64: 16, 16>}, {pipeline_mode = #tpu.pipeline_mode<synchronous>, transform_indices = @transform_7, window_bounds = array<i64: 16, 512>}, {pipeline_mode = #tpu.pipeline_mode<synchronous>, transform_indices = @transform_8, window_bounds = array<i64: 512, 128>}, {pipeline_mode = #tpu.pipeline_mode<synchronous>, transform_indices = @transform_9, window_bounds = array<i64: 128, 128>}, {pipeline_mode = #tpu.pipeline_mode<synchronous>, transform_indices = @transform_10, window_bounds = array<i64: 1, 128>}, {transform_indices = @transform_11, window_bounds = array<i64: 2, 128>}]} {
    %c0 = arith.constant 0 : index
    %c0_0 = arith.constant 0 : index
    %0 = vector.load %arg1[%c0, %c0_0] : memref<2x512xbf16, #tpu.memory_space<vmem>>, vector<2x512xbf16>
    %c0_1 = arith.constant 0 : index
    %c0_2 = arith.constant 0 : index
    %1 = vector.load %arg3[%c0_1, %c0_2] : memref<512x256xbf16, #tpu.memory_space<vmem>>, vector<512x256xbf16>
    %cst = arith.constant dense<0.000000e+00> : vector<2x256xf32>
    %2 = tpu.matmul %0, %1, %cst {dimension_numbers = #tpu.dot_dimension_numbers<[1], [0], [0], [1], [0, 0, 1, 1], [], []>} : vector<2x512xbf16>, vector<512x256xbf16>, vector<2x256xf32> -> vector<2x256xf32>
    %c0_3 = arith.constant 0 : index
    %c0_4 = arith.constant 0 : index
    %3 = vector.load %arg4[%c0_3, %c0_4] : memref<1x256xf32, #tpu.memory_space<vmem>>, vector<1x256xf32>
    %4 = vector.broadcast %3 : vector<1x256xf32> to vector<2x256xf32>
    %5 = arith.addf %2, %4 : vector<2x256xf32>
    %cst_5 = arith.constant 0.000000e+00 : f32
    %6 = vector.broadcast %cst_5 : f32 to vector<2x256xf32>
    %7 = arith.maximumf %5, %6 : vector<2x256xf32>
    %c0_6 = arith.constant 0 : index
    %c0_7 = arith.constant 0 : index
    %8 = vector.load %arg5[%c0_6, %c0_7] : memref<256x16xf32, #tpu.memory_space<vmem>>, vector<256x16xf32>
    %cst_8 = arith.constant dense<0.000000e+00> : vector<2x16xf32>
    %9 = tpu.matmul %7, %8, %cst_8 {dimension_numbers = #tpu.dot_dimension_numbers<[1], [0], [0], [1], [0, 0, 1, 1], [], []>} : vector<2x256xf32>, vector<256x16xf32>, vector<2x16xf32> -> vector<2x16xf32>
    %c0_9 = arith.constant 0 : index
    %c0_10 = arith.constant 0 : index
    %10 = vector.load %arg6[%c0_9, %c0_10] : memref<1x1xf32, #tpu.memory_space<vmem>>, vector<1x1xf32>
    %11 = vector.broadcast %10 : vector<1x1xf32> to vector<2x16xf32>
    %12 = arith.addf %9, %11 : vector<2x16xf32>
    %cst_11 = arith.constant dense<0xFF800000> : vector<2xf32>
    %13 = vector.multi_reduction <maximumf>, %12, %cst_11 [1] : vector<2x16xf32> to vector<2xf32>
    %14 = vector.shape_cast %13 : vector<2xf32> to vector<2x1xf32>
    %15 = vector.broadcast %14 : vector<2x1xf32> to vector<2x16xf32>
    %16 = arith.subf %12, %15 : vector<2x16xf32>
    %17 = math.exp %16 : vector<2x16xf32>
    %c0_12 = arith.constant 0 : index
    %c0_13 = arith.constant 0 : index
    %18 = vector.load %arg7[%c0_12, %c0_13] : memref<16x16xf32, #tpu.memory_space<vmem>>, vector<16x16xf32>
    %cst_14 = arith.constant dense<0.000000e+00> : vector<2x16xf32>
    %19 = tpu.matmul %17, %18, %cst_14 {dimension_numbers = #tpu.dot_dimension_numbers<[1], [0], [0], [1], [0, 0, 1, 1], [], []>} : vector<2x16xf32>, vector<16x16xf32>, vector<2x16xf32> -> vector<2x16xf32>
    %20 = arith.divf %17, %19 : vector<2x16xf32>
    %c0_15 = arith.constant 0 : index
    %c0_16 = arith.constant 0 : index
    %21 = vector.load %arg8[%c0_15, %c0_16] : memref<16x512xf32, #tpu.memory_space<vmem>>, vector<16x512xf32>
    %cst_17 = arith.constant dense<0.000000e+00> : vector<2x512xf32>
    %22 = tpu.matmul %20, %21, %cst_17 {dimension_numbers = #tpu.dot_dimension_numbers<[1], [0], [0], [1], [0, 0, 1, 1], [], []>} : vector<2x16xf32>, vector<16x512xf32>, vector<2x512xf32> -> vector<2x512xf32>
    %23 = arith.extf %0 : vector<2x512xbf16> to vector<2x512xf32>
    %24 = arith.mulf %22, %23 : vector<2x512xf32>
    %c0_18 = arith.constant 0 : index
    %c0_19 = arith.constant 0 : index
    %25 = vector.load %arg9[%c0_18, %c0_19] : memref<512x128xf32, #tpu.memory_space<vmem>>, vector<512x128xf32>
    %cst_20 = arith.constant dense<0.000000e+00> : vector<2x128xf32>
    %26 = tpu.matmul %24, %25, %cst_20 {dimension_numbers = #tpu.dot_dimension_numbers<[1], [0], [0], [1], [0, 0, 1, 1], [], []>} : vector<2x512xf32>, vector<512x128xf32>, vector<2x128xf32> -> vector<2x128xf32>
    %c0_21 = arith.constant 0 : index
    %c0_22 = arith.constant 0 : index
    %27 = vector.load %arg2[%c0_21, %c0_22] : memref<2x128xbf16, #tpu.memory_space<vmem>>, vector<2x128xbf16>
    %c0_23 = arith.constant 0 : index
    %c0_24 = arith.constant 0 : index
    %28 = vector.load %arg10[%c0_23, %c0_24] : memref<128x128xbf16, #tpu.memory_space<vmem>>, vector<128x128xbf16>
    %cst_25 = arith.constant dense<0.000000e+00> : vector<2x128xf32>
    %29 = tpu.matmul %27, %28, %cst_25 {dimension_numbers = #tpu.dot_dimension_numbers<[1], [0], [0], [1], [0, 0, 1, 1], [], []>} : vector<2x128xbf16>, vector<128x128xbf16>, vector<2x128xf32> -> vector<2x128xf32>
    %30 = arith.addf %26, %29 : vector<2x128xf32>
    %c0_26 = arith.constant 0 : index
    %c0_27 = arith.constant 0 : index
    %31 = vector.load %arg11[%c0_26, %c0_27] : memref<1x128xf32, #tpu.memory_space<vmem>>, vector<1x128xf32>
    %32 = vector.broadcast %31 : vector<1x128xf32> to vector<2x128xf32>
    %33 = arith.addf %30, %32 : vector<2x128xf32>
    %cst_28 = arith.constant 0.000000e+00 : f32
    %34 = vector.broadcast %cst_28 : f32 to vector<2x128xf32>
    %35 = arith.maximumf %33, %34 : vector<2x128xf32>
    %c0_29 = arith.constant 0 : index
    %c0_30 = arith.constant 0 : index
    %36 = vector.load %arg12[%c0_29, %c0_30] : memref<2x128xf32, #tpu.memory_space<vmem>>, vector<2x128xf32>
    tpu.vector_store %arg12[%c0_29, %c0_30], %35 {strides = array<i32>} : memref<2x128xf32, #tpu.memory_space<vmem>>, vector<2x128xf32>,
    return
  }
  func.func @transform_0(%arg0: i32) -> (i32, i32) {
    %c0_i32 = arith.constant 0 : i32
    %c0_i32_0 = arith.constant 0 : i32
    return %arg0, %c0_i32 : i32, i32
  }
  func.func @transform_1(%arg0: i32) -> (i32, i32) {
    %c0_i32 = arith.constant 0 : i32
    %c0_i32_0 = arith.constant 0 : i32
    return %arg0, %c0_i32 : i32, i32
  }
  func.func @transform_2(%arg0: i32) -> (i32, i32) {
    %c0_i32 = arith.constant 0 : i32
    %c0_i32_0 = arith.constant 0 : i32
    %c0_i32_1 = arith.constant 0 : i32
    return %c0_i32, %c0_i32_0 : i32, i32
  }
  func.func @transform_3(%arg0: i32) -> (i32, i32) {
    %c0_i32 = arith.constant 0 : i32
    %c0_i32_0 = arith.constant 0 : i32
    %c0_i32_1 = arith.constant 0 : i32
    return %c0_i32, %c0_i32_0 : i32, i32
  }
  func.func @transform_4(%arg0: i32) -> (i32, i32) {
    %c0_i32 = arith.constant 0 : i32
    %c0_i32_0 = arith.constant 0 : i32
    %c0_i32_1 = arith.constant 0 : i32
    return %c0_i32, %c0_i32_0 : i32, i32
  }
  func.func @transform_5(%arg0: i32) -> (i32, i32) {
    %c0_i32 = arith.constant 0 : i32
    %c0_i32_0 = arith.constant 0 : i32
    %c0_i32_1 = arith.constant 0 : i32
    return %c0_i32, %c0_i32_0 : i32, i32
  }
  func.func @transform_6(%arg0: i32) -> (i32, i32) {
    %c0_i32 = arith.constant 0 : i32
    %c0_i32_0 = arith.constant 0 : i32
    %c0_i32_1 = arith.constant 0 : i32
    return %c0_i32, %c0_i32_0 : i32, i32
  }
  func.func @transform_7(%arg0: i32) -> (i32, i32) {
    %c0_i32 = arith.constant 0 : i32
    %c0_i32_0 = arith.constant 0 : i32
    %c0_i32_1 = arith.constant 0 : i32
    return %c0_i32, %c0_i32_0 : i32, i32
  }
  func.func @transform_8(%arg0: i32) -> (i32, i32) {
    %c0_i32 = arith.constant 0 : i32
    %c0_i32_0 = arith.constant 0 : i32
    %c0_i32_1 = arith.constant 0 : i32
    return %c0_i32, %c0_i32_0 : i32, i32
  }
  func.func @transform_9(%arg0: i32) -> (i32, i32) {
    %c0_i32 = arith.constant 0 : i32
    %c0_i32_0 = arith.constant 0 : i32
    %c0_i32_1 = arith.constant 0 : i32
    return %c0_i32, %c0_i32_0 : i32, i32
  }
  func.func @transform_10(%arg0: i32) -> (i32, i32) {
    %c0_i32 = arith.constant 0 : i32
    %c0_i32_0 = arith.constant 0 : i32
    %c0_i32_1 = arith.constant 0 : i32
    return %c0_i32, %c0_i32_0 : i32, i32
  }
  func.func @transform_11(%arg0: i32) -> (i32, i32) {
    %c0_i32 = arith.constant 0 : i32
    %c0_i32_0 = arith.constant 0 : i32
    return %arg0, %c0_i32 : i32, i32
  }
}

</mosaic_0001>

<llo_original>
// kernel: tpu_custom_call.1
$region0: #{tpu_custom_call.1}
  #allocation0 [shape = 'u32[]', space=smem, size = 0x4, offset = 0x4, fixed_abs, tag = 'smem constant byte address 0x4 - core index']
  #allocation1 [shape = 'u32[72,128]{1,0:T(1,128)}', space=vmem, size = 0x9000, scoped, tag = 'internal scratch']
  #allocation2 [shape = 'f32[1,1]{1,0:T(1,128)S(1)}', space=vmem, size = 0x200, scoped, tag = 'scoped memory for tpu_custom_call.1']
  %s0 = inlined_call_operand.vmem [shape: bf16[2,512], index: 0, kind: input, shape index: {}]
  %s1 = inlined_call_operand.vmem [shape: bf16[2,128], index: 1, kind: input, shape index: {}]
  %s2 = inlined_call_operand.hbm [shape: bf16[512,256], index: 2, kind: input, shape index: {}]
  %s3 = inlined_call_operand.vmem [shape: f32[1,256], index: 3, kind: input, shape index: {}]
  %s4 = inlined_call_operand.vmem [shape: f32[256,16], index: 4, kind: input, shape index: {}]
  %s5 = inlined_call_operand.<no memory space> [shape: f32[1,1], index: 5, kind: input, shape index: {}]
  %s6 = inlined_call_operand.vmem [shape: f32[16,16], index: 6, kind: input, shape index: {}]
  %s7 = inlined_call_operand.vmem [shape: f32[16,512], index: 7, kind: input, shape index: {}]
  %s8 = inlined_call_operand.hbm [shape: f32[512,128], index: 8, kind: input, shape index: {}]
  %s9 = inlined_call_operand.vmem [shape: bf16[128,128], index: 9, kind: input, shape index: {}]
  %s10 = inlined_call_operand.vmem [shape: f32[1,128], index: 10, kind: input, shape index: {}]
  %s11 = inlined_call_operand.hbm [shape: f32[2,128], index: 11, kind: output, shape index: {}]
  %s12 = sld [smem:[#allocation0]]
  $region62: #{tpu_custom_call.1} parent=0
    _
  %s14 = ssub.s32 1, %s12
  %s15 = scalar_select 0, %s14, %s12
  %v16 = vstv %s5
  %17 = vst [vmem:[#allocation2] sm:$0x1] %v16
  $region1: #{tpu_custom_call.1} parent=0
    #allocation3 [shape = 'u8[262144]{0}', space=vmem, size = 0x40000, scoped, tag = 'input window, operand 2, single buffered']
    #allocation4 [shape = 's32[1]{0}', space=sflag, size = 0x4, scoped, tag = 'scoped memory for tpu_custom_call.1']
    #allocation5 [shape = 's32[1]{0}', space=sflag, size = 0x4, scoped, tag = 'scoped memory for tpu_custom_call.1']
    #allocation6 [shape = 'u8[262144]{0}', space=vmem, size = 0x40000, scoped, tag = 'input window, operand 8, single buffered']
    #allocation7 [shape = 's32[1]{0}', space=sflag, size = 0x4, scoped, tag = 'scoped memory for tpu_custom_call.1']
    #allocation8 [shape = 'u8[1024]{0}', space=vmem, size = 0x400, scoped, tag = 'output window, operand 0, single buffered']
    %18 = vsyncpa [#allocation4], 0
    %19 = vsyncpa [#allocation7], 0
    %20 = vsyncpa [#allocation5], 0
    // Predicated region
    $region2: #{tpu_custom_call.1} parent=1 // pred_check
      _
    $region3: #{tpu_custom_call.1} parent=1 // pred_check_branch
      %22 = sbr.rel (0) target = $region5
    $region4: #{tpu_custom_call.1} parent=1 // pred_region
      _
    $region5: #{tpu_custom_call.1} parent=1 // pred_fallthru
      _
    // Predicated region
    $region6: #{tpu_custom_call.1} parent=1 // pred_check
      _
    $region7: #{tpu_custom_call.1} parent=1 // pred_check_branch
      %24 = sbr.rel (0) target = $region9
    $region8: #{tpu_custom_call.1} parent=1 // pred_region
      _
    $region9: #{tpu_custom_call.1} parent=1 // pred_fallthru
      _
    // Predicated region
    $region10: #{tpu_custom_call.1} parent=1 // pred_check
      _
    $region11: #{tpu_custom_call.1} parent=1 // pred_check_branch
      %26 = sbr.rel (0) target = $region13
    $region12: #{tpu_custom_call.1} parent=1 // pred_region
      %28 = vsyncadd [#allocation4], 0
      %s29 = sshll.u32 %s2, 4
      %s30 = int_to_ptr.hbm [resolvable:$true] %s29
      %s31 = sshll.u32 [#allocation3], 4
      %s32 = int_to_ptr.vmem [resolvable:$true] %s31
      %37 = dma.hbm_to_vmem [thread:$0]  %s30, 8192, %s32, [#allocation4], 128, 128, 8
    $region13: #{tpu_custom_call.1} parent=1 // pred_fallthru
      _
    // Predicated region
    $region14: #{tpu_custom_call.1} parent=1 // pred_check
      _
    $region15: #{tpu_custom_call.1} parent=1 // pred_check_branch
      %39 = sbr.rel (0) target = $region17
    $region16: #{tpu_custom_call.1} parent=1 // pred_region
      _
    $region17: #{tpu_custom_call.1} parent=1 // pred_fallthru
      _
    // Predicated region
    $region18: #{tpu_custom_call.1} parent=1 // pred_check
      _
    $region19: #{tpu_custom_call.1} parent=1 // pred_check_branch
      %41 = sbr.rel (0) target = $region21
    $region20: #{tpu_custom_call.1} parent=1 // pred_region
      _
    $region21: #{tpu_custom_call.1} parent=1 // pred_fallthru
      _
    // Predicated region
    $region22: #{tpu_custom_call.1} parent=1 // pred_check
      _
    $region23: #{tpu_custom_call.1} parent=1 // pred_check_branch
      %43 = sbr.rel (0) target = $region25
    $region24: #{tpu_custom_call.1} parent=1 // pred_region
      _
    $region25: #{tpu_custom_call.1} parent=1 // pred_fallthru
      _
    // Predicated region
    $region26: #{tpu_custom_call.1} parent=1 // pred_check
      _
    $region27: #{tpu_custom_call.1} parent=1 // pred_check_branch
      %45 = sbr.rel (0) target = $region29
    $region28: #{tpu_custom_call.1} parent=1 // pred_region
      _
    $region29: #{tpu_custom_call.1} parent=1 // pred_fallthru
      _
    // Predicated region
    $region30: #{tpu_custom_call.1} parent=1 // pred_check
      _
    $region31: #{tpu_custom_call.1} parent=1 // pred_check_branch
      %47 = sbr.rel (0) target = $region33
    $region32: #{tpu_custom_call.1} parent=1 // pred_region
      _
    $region33: #{tpu_custom_call.1} parent=1 // pred_fallthru
      _
    // Predicated region
    $region34: #{tpu_custom_call.1} parent=1 // pred_check
      _
    $region35: #{tpu_custom_call.1} parent=1 // pred_check_branch
      %49 = sbr.rel (0) target = $region37
    $region36: #{tpu_custom_call.1} parent=1 // pred_region
      %51 = vsyncadd [#allocation7], 0
      %s52 = sshll.u32 %s8, 4
      %s53 = int_to_ptr.hbm [resolvable:$true] %s52
      %s54 = sshll.u32 [#allocation6], 4
      %s55 = int_to_ptr.vmem [resolvable:$true] %s54
      %60 = dma.hbm_to_vmem [thread:$0]  %s53, 8192, %s55, [#allocation7], 128, 128, 8
    $region37: #{tpu_custom_call.1} parent=1 // pred_fallthru
      _
    // Predicated region
    $region38: #{tpu_custom_call.1} parent=1 // pred_check
      _
    $region39: #{tpu_custom_call.1} parent=1 // pred_check_branch
      %62 = sbr.rel (0) target = $region41
    $region40: #{tpu_custom_call.1} parent=1 // pred_region
      _
    $region41: #{tpu_custom_call.1} parent=1 // pred_fallthru
      _
    // Predicated region
    $region42: #{tpu_custom_call.1} parent=1 // pred_check
      _
    $region43: #{tpu_custom_call.1} parent=1 // pred_check_branch
      %64 = sbr.rel (0) target = $region45
    $region44: #{tpu_custom_call.1} parent=1 // pred_region
      _
    $region45: #{tpu_custom_call.1} parent=1 // pred_fallthru
      _
    // Predicated region
    $region46: #{tpu_custom_call.1} parent=1 // pred_check
      _
    $region47: #{tpu_custom_call.1} parent=1 // pred_check_branch
      %66 = sbr.rel (0) target = $region49
    $region48: #{tpu_custom_call.1} parent=1 // pred_region
      %68 = dma.done [#allocation4], 8192
    $region49: #{tpu_custom_call.1} parent=1 // pred_fallthru
      _
    // Predicated region
    $region50: #{tpu_custom_call.1} parent=1 // pred_check
      _
    $region51: #{tpu_custom_call.1} parent=1 // pred_check_branch
      %70 = sbr.rel (0) target = $region53
    $region52: #{tpu_custom_call.1} parent=1 // pred_region
      %72 = dma.done [#allocation7], 8192
    $region53: #{tpu_custom_call.1} parent=1 // pred_fallthru
      _
    %v73 = vld [vmem:[%s0] sm:$0xf]
    %v74 = vld [vmem:[#allocation3] sm:$0xff]
    %v75 = vld [vmem:[#allocation3 + $0x8] sm:$0xff]
    %v76 = vld [vmem:[#allocation3 + $0x10] sm:$0xff]
    %v77 = vld [vmem:[#allocation3 + $0x18] sm:$0xff]
    %v78 = vld [vmem:[#allocation3 + $0x20] sm:$0xff]
    %v79 = vld [vmem:[#allocation3 + $0x28] sm:$0xff]
    %v80 = vld [vmem:[#allocation3 + $0x30] sm:$0xff]
    %v81 = vld [vmem:[#allocation3 + $0x38] sm:$0xff]
    %v82 = vld [vmem:[#allocation3 + $0x40] sm:$0xff]
    %v83 = vld [vmem:[#allocation3 + $0x48] sm:$0xff]
    %v84 = vld [vmem:[#allocation3 + $0x50] sm:$0xff]
    %v85 = vld [vmem:[#allocation3 + $0x58] sm:$0xff]
    %v86 = vld [vmem:[#allocation3 + $0x60] sm:$0xff]
    %v87 = vld [vmem:[#allocation3 + $0x68] sm:$0xff]
    %v88 = vld [vmem:[#allocation3 + $0x70] sm:$0xff]
    %v89 = vld [vmem:[#allocation3 + $0x78] sm:$0xff]
    %v90 = vld [vmem:[#allocation3 + $0x80] sm:$0xff]
    %v91 = vld [vmem:[#allocation3 + $0x88] sm:$0xff]
    %v92 = vld [vmem:[#allocation3 + $0x90] sm:$0xff]
    %v93 = vld [vmem:[#allocation3 + $0x98] sm:$0xff]
    %v94 = vld [vmem:[#allocation3 + $0xa0] sm:$0xff]
    %v95 = vld [vmem:[#allocation3 + $0xa8] sm:$0xff]
    %v96 = vld [vmem:[#allocation3 + $0xb0] sm:$0xff]
    %v97 = vld [vmem:[#allocation3 + $0xb8] sm:$0xff]
    %v98 = vld [vmem:[#allocation3 + $0xc0] sm:$0xff]
    %v99 = vld [vmem:[#allocation3 + $0xc8] sm:$0xff]
    %v100 = vld [vmem:[#allocation3 + $0xd0] sm:$0xff]
    %v101 = vld [vmem:[#allocation3 + $0xd8] sm:$0xff]
    %v102 = vld [vmem:[#allocation3 + $0xe0] sm:$0xff]
    %v103 = vld [vmem:[#allocation3 + $0xe8] sm:$0xff]
    %v104 = vld [vmem:[#allocation3 + $0xf0] sm:$0xff]
    %v105 = vld [vmem:[#allocation3 + $0xf8] sm:$0xff]
    %v106 = vld [vmem:[#allocation3 + $0x100] sm:$0xff]
    %v107 = vld [vmem:[#allocation3 + $0x108] sm:$0xff]
    %v108 = vld [vmem:[#allocation3 + $0x110] sm:$0xff]
    %v109 = vld [vmem:[#allocation3 + $0x118] sm:$0xff]
    %v110 = vld [vmem:[#allocation3 + $0x120] sm:$0xff]
    %v111 = vld [vmem:[#allocation3 + $0x128] sm:$0xff]
    %v112 = vld [vmem:[#allocation3 + $0x130] sm:$0xff]
    %v113 = vld [vmem:[#allocation3 + $0x138] sm:$0xff]
    %v114 = vld [vmem:[#allocation3 + $0x140] sm:$0xff]
    %v115 = vld [vmem:[#allocation3 + $0x148] sm:$0xff]
    %v116 = vld [vmem:[#allocation3 + $0x150] sm:$0xff]
    %v117 = vld [vmem:[#allocation3 + $0x158] sm:$0xff]
    %v118 = vld [vmem:[#allocation3 + $0x160] sm:$0xff]
    %v119 = vld [vmem:[#allocation3 + $0x168] sm:$0xff]
    %v120 = vld [vmem:[#allocation3 + $0x170] sm:$0xff]
    %v121 = vld [vmem:[#allocation3 + $0x178] sm:$0xff]
    %v122 = vld [vmem:[#allocation3 + $0x180] sm:$0xff]
    %v123 = vld [vmem:[#allocation3 + $0x188] sm:$0xff]
    %v124 = vld [vmem:[#allocation3 + $0x190] sm:$0xff]
    %v125 = vld [vmem:[#allocation3 + $0x198] sm:$0xff]
    %v126 = vld [vmem:[#allocation3 + $0x1a0] sm:$0xff]
    %v127 = vld [vmem:[#allocation3 + $0x1a8] sm:$0xff]
    %v128 = vld [vmem:[#allocation3 + $0x1b0] sm:$0xff]
    %v129 = vld [vmem:[#allocation3 + $0x1b8] sm:$0xff]
    %v130 = vld [vmem:[#allocation3 + $0x1c0] sm:$0xff]
    %v131 = vld [vmem:[#allocation3 + $0x1c8] sm:$0xff]
    %v132 = vld [vmem:[#allocation3 + $0x1d0] sm:$0xff]
    %v133 = vld [vmem:[#allocation3 + $0x1d8] sm:$0xff]
    %v134 = vld [vmem:[#allocation3 + $0x1e0] sm:$0xff]
    %v135 = vld [vmem:[#allocation3 + $0x1e8] sm:$0xff]
    %v136 = vld [vmem:[#allocation3 + $0x1f0] sm:$0xff]
    %v137 = vld [vmem:[#allocation3 + $0x1f8] sm:$0xff]
    %v138 = vld [vmem:[%s3] sm:$0x3]
    %v140 = vperm.slane %v138, 0
    %v141 = vperm.slane %v138, 1
    %145 = vst [vmem:[#allocation1] ss:$9 sm:$0xff] %v73
    %v146 = vld [vmem:[#allocation1] sm:$0xff]
    %v147 = vld [vmem:[#allocation1 + $0x9] sm:$0xff]
    %v148 = vld [vmem:[#allocation1 + $0x12] sm:$0xff]
    %v149 = vld [vmem:[#allocation1 + $0x1b] sm:$0xff]
    %v218 = vunpack.c.l.b16 %v74
    %v219 = vunpack.c.h.b16 %v74
    %v220 = vunpack.c.l.b16 %v75
    %v221 = vunpack.c.h.b16 %v75
    %v222 = vunpack.c.l.b16 %v76
    %v223 = vunpack.c.h.b16 %v76
    %v224 = vunpack.c.l.b16 %v77
    %v225 = vunpack.c.h.b16 %v77
    %v226 = vunpack.c.l.b16 %v78
    %v227 = vunpack.c.h.b16 %v78
    %v228 = vunpack.c.l.b16 %v79
    %v229 = vunpack.c.h.b16 %v79
    %v230 = vunpack.c.l.b16 %v80
    %v231 = vunpack.c.h.b16 %v80
    %v232 = vunpack.c.l.b16 %v81
    %v233 = vunpack.c.h.b16 %v81
    %v234 = vunpack.c.l.b16 %v82
    %v235 = vunpack.c.h.b16 %v82
    %v236 = vunpack.c.l.b16 %v83
    %v237 = vunpack.c.h.b16 %v83
    %v238 = vunpack.c.l.b16 %v84
    %v239 = vunpack.c.h.b16 %v84
    %v240 = vunpack.c.l.b16 %v85
    %v241 = vunpack.c.h.b16 %v85
    %v242 = vunpack.c.l.b16 %v86
    %v243 = vunpack.c.h.b16 %v86
    %v244 = vunpack.c.l.b16 %v87
    %v245 = vunpack.c.h.b16 %v87
    %v246 = vunpack.c.l.b16 %v88
    %v247 = vunpack.c.h.b16 %v88
    %v248 = vunpack.c.l.b16 %v89
    %v249 = vunpack.c.h.b16 %v89
    %v250 = vunpack.c.l.b16 %v90
    %v251 = vunpack.c.h.b16 %v90
    %v252 = vunpack.c.l.b16 %v91
    %v253 = vunpack.c.h.b16 %v91
    %v254 = vunpack.c.l.b16 %v92
    %v255 = vunpack.c.h.b16 %v92
    %v256 = vunpack.c.l.b16 %v93
    %v257 = vunpack.c.h.b16 %v93
    %v258 = vunpack.c.l.b16 %v94
    %v259 = vunpack.c.h.b16 %v94
    %v260 = vunpack.c.l.b16 %v95
    %v261 = vunpack.c.h.b16 %v95
    %v262 = vunpack.c.l.b16 %v96
    %v263 = vunpack.c.h.b16 %v96
    %v264 = vunpack.c.l.b16 %v97
    %v265 = vunpack.c.h.b16 %v97
    %v266 = vunpack.c.l.b16 %v98
    %v267 = vunpack.c.h.b16 %v98
    %v268 = vunpack.c.l.b16 %v99
    %v269 = vunpack.c.h.b16 %v99
    %v270 = vunpack.c.l.b16 %v100
    %v271 = vunpack.c.h.b16 %v100
    %v272 = vunpack.c.l.b16 %v101
    %v273 = vunpack.c.h.b16 %v101
    %v274 = vunpack.c.l.b16 %v102
    %v275 = vunpack.c.h.b16 %v102
    %v276 = vunpack.c.l.b16 %v103
    %v277 = vunpack.c.h.b16 %v103
    %v278 = vunpack.c.l.b16 %v104
    %v279 = vunpack.c.h.b16 %v104
    %v280 = vunpack.c.l.b16 %v105
    %v281 = vunpack.c.h.b16 %v105
    %v282 = vunpack.c.l.b16 %v106
    %v283 = vunpack.c.h.b16 %v106
    %v284 = vunpack.c.l.b16 %v107
    %v285 = vunpack.c.h.b16 %v107
    %v286 = vunpack.c.l.b16 %v108
    %v287 = vunpack.c.h.b16 %v108
    %v288 = vunpack.c.l.b16 %v109
    %v289 = vunpack.c.h.b16 %v109
    %v290 = vunpack.c.l.b16 %v110
    %v291 = vunpack.c.h.b16 %v110
    %v292 = vunpack.c.l.b16 %v111
    %v293 = vunpack.c.h.b16 %v111
    %v294 = vunpack.c.l.b16 %v112
    %v295 = vunpack.c.h.b16 %v112
    %v296 = vunpack.c.l.b16 %v113
    %v297 = vunpack.c.h.b16 %v113
    %v298 = vunpack.c.l.b16 %v114
    %v299 = vunpack.c.h.b16 %v114
    %v300 = vunpack.c.l.b16 %v115
    %v301 = vunpack.c.h.b16 %v115
    %v302 = vunpack.c.l.b16 %v116
    %v303 = vunpack.c.h.b16 %v116
    %v304 = vunpack.c.l.b16 %v117
    %v305 = vunpack.c.h.b16 %v117
    %v306 = vunpack.c.l.b16 %v118
    %v307 = vunpack.c.h.b16 %v118
    %v308 = vunpack.c.l.b16 %v119
    %v309 = vunpack.c.h.b16 %v119
    %v310 = vunpack.c.l.b16 %v120
    %v311 = vunpack.c.h.b16 %v120
    %v312 = vunpack.c.l.b16 %v121
    %v313 = vunpack.c.h.b16 %v121
    %v314 = vunpack.c.l.b16 %v122
    %v315 = vunpack.c.h.b16 %v122
    %v316 = vunpack.c.l.b16 %v123
    %v317 = vunpack.c.h.b16 %v123
    %v318 = vunpack.c.l.b16 %v124
    %v319 = vunpack.c.h.b16 %v124
    %v320 = vunpack.c.l.b16 %v125
    %v321 = vunpack.c.h.b16 %v125
    %v322 = vunpack.c.l.b16 %v126
    %v323 = vunpack.c.h.b16 %v126
    %v324 = vunpack.c.l.b16 %v127
    %v325 = vunpack.c.h.b16 %v127
    %v326 = vunpack.c.l.b16 %v128
    %v327 = vunpack.c.h.b16 %v128
    %v328 = vunpack.c.l.b16 %v129
    %v329 = vunpack.c.h.b16 %v129
    %v330 = vunpack.c.l.b16 %v130
    %v331 = vunpack.c.h.b16 %v130
    %v332 = vunpack.c.l.b16 %v131
    %v333 = vunpack.c.h.b16 %v131
    %v334 = vunpack.c.l.b16 %v132
    %v335 = vunpack.c.h.b16 %v132
    %v336 = vunpack.c.l.b16 %v133
    %v337 = vunpack.c.h.b16 %v133
    %v338 = vunpack.c.l.b16 %v134
    %v339 = vunpack.c.h.b16 %v134
    %v340 = vunpack.c.l.b16 %v135
    %v341 = vunpack.c.h.b16 %v135
    %v342 = vunpack.c.l.b16 %v136
    %v343 = vunpack.c.h.b16 %v136
    %v344 = vunpack.c.l.b16 %v137
    %v345 = vunpack.c.h.b16 %v137
    %v346 = vpack.c.b16 %v220, %v218
    %v347 = vpack.c.b16 %v221, %v219
    %v348 = vpack.c.b16 %v224, %v222
    %v349 = vpack.c.b16 %v225, %v223
    %v350 = vpack.c.b16 %v228, %v226
    %v351 = vpack.c.b16 %v229, %v227
    %v352 = vpack.c.b16 %v232, %v230
    %v353 = vpack.c.b16 %v233, %v231
    %v354 = vpack.c.b16 %v236, %v234
    %v355 = vpack.c.b16 %v237, %v235
    %v356 = vpack.c.b16 %v240, %v238
    %v357 = vpack.c.b16 %v241, %v239
    %v358 = vpack.c.b16 %v244, %v242
    %v359 = vpack.c.b16 %v245, %v243
    %v360 = vpack.c.b16 %v248, %v246
    %v361 = vpack.c.b16 %v249, %v247
    %v362 = vpack.c.b16 %v252, %v250
    %v363 = vpack.c.b16 %v253, %v251
    %v364 = vpack.c.b16 %v256, %v254
    %v365 = vpack.c.b16 %v257, %v255
    %v366 = vpack.c.b16 %v260, %v258
    %v367 = vpack.c.b16 %v261, %v259
    %v368 = vpack.c.b16 %v264, %v262
    %v369 = vpack.c.b16 %v265, %v263
    %v370 = vpack.c.b16 %v268, %v266
    %v371 = vpack.c.b16 %v269, %v267
    %v372 = vpack.c.b16 %v272, %v270
    %v373 = vpack.c.b16 %v273, %v271
    %v374 = vpack.c.b16 %v276, %v274
    %v375 = vpack.c.b16 %v277, %v275
    %v376 = vpack.c.b16 %v280, %v278
    %v377 = vpack.c.b16 %v281, %v279
    %v378 = vpack.c.b16 %v284, %v282
    %v379 = vpack.c.b16 %v285, %v283
    %v380 = vpack.c.b16 %v288, %v286
    %v381 = vpack.c.b16 %v289, %v287
    %v382 = vpack.c.b16 %v292, %v290
    %v383 = vpack.c.b16 %v293, %v291
    %v384 = vpack.c.b16 %v296, %v294
    %v385 = vpack.c.b16 %v297, %v295
    %v386 = vpack.c.b16 %v300, %v298
    %v387 = vpack.c.b16 %v301, %v299
    %v388 = vpack.c.b16 %v304, %v302
    %v389 = vpack.c.b16 %v305, %v303
    %v390 = vpack.c.b16 %v308, %v306
    %v391 = vpack.c.b16 %v309, %v307
    %v392 = vpack.c.b16 %v312, %v310
    %v393 = vpack.c.b16 %v313, %v311
    %v394 = vpack.c.b16 %v316, %v314
    %v395 = vpack.c.b16 %v317, %v315
    %v396 = vpack.c.b16 %v320, %v318
    %v397 = vpack.c.b16 %v321, %v319
    %v398 = vpack.c.b16 %v324, %v322
    %v399 = vpack.c.b16 %v325, %v323
    %v400 = vpack.c.b16 %v328, %v326
    %v401 = vpack.c.b16 %v329, %v327
    %v402 = vpack.c.b16 %v332, %v330
    %v403 = vpack.c.b16 %v333, %v331
    %v404 = vpack.c.b16 %v336, %v334
    %v405 = vpack.c.b16 %v337, %v335
    %v406 = vpack.c.b16 %v340, %v338
    %v407 = vpack.c.b16 %v341, %v339
    %v408 = vpack.c.b16 %v344, %v342
    %v409 = vpack.c.b16 %v345, %v343
    %474 = vmatpush.bf16.msra.mxu0 %v360
    %475 = vmatpush.bf16.msra.mxu0 %v358
    %476 = vmatpush.bf16.msra.mxu0 %v356
    %477 = vmatpush.bf16.msra.mxu0 %v354
    %478 = vmatpush.bf16.msra.mxu0 %v352
    %479 = vmatpush.bf16.msra.mxu0 %v350
    %480 = vmatpush.bf16.msra.mxu0 %v348
    %481 = vmatpush.bf16.msra.mxu0 %v346
    %482 = vmatmul.bf16.gmra.mxu0 %v146
    %v483 = vpop.f32.mrf.mxu0
    %v484 = vadd.f32 %v140, %v483
    %v485 = vpop.f32.mrf.mxu0
    %486 = vdwg.mxu0
    %487 = vmatpush.bf16.msra.mxu0 %v376
    %488 = vmatpush.bf16.msra.mxu0 %v374
    %489 = vmatpush.bf16.msra.mxu0 %v372
    %490 = vmatpush.bf16.msra.mxu0 %v370
    %491 = vmatpush.bf16.msra.mxu0 %v368
    %492 = vmatpush.bf16.msra.mxu0 %v366
    %493 = vmatpush.bf16.msra.mxu0 %v364
    %494 = vmatpush.bf16.msra.mxu0 %v362
    %495 = vmatmul.bf16.gmra.mxu0 %v147
    %v496 = vpop.f32.mrf.mxu0
    %v497 = vadd.f32 %v484, %v496
    %v498 = vpop.f32.mrf.mxu0
    %499 = vdwg.mxu0
    %500 = vmatpush.bf16.msra.mxu0 %v392
    %501 = vmatpush.bf16.msra.mxu0 %v390
    %502 = vmatpush.bf16.msra.mxu0 %v388
    %503 = vmatpush.bf16.msra.mxu0 %v386
    %504 = vmatpush.bf16.msra.mxu0 %v384
    %505 = vmatpush.bf16.msra.mxu0 %v382
    %506 = vmatpush.bf16.msra.mxu0 %v380
    %507 = vmatpush.bf16.msra.mxu0 %v378
    %508 = vmatmul.bf16.gmra.mxu0 %v148
    %v509 = vpop.f32.mrf.mxu0
    %v510 = vadd.f32 %v497, %v509
    %v511 = vpop.f32.mrf.mxu0
    %512 = vdwg.mxu0
    %513 = vmatpush.bf16.msra.mxu0 %v408
    %514 = vmatpush.bf16.msra.mxu0 %v406
    %515 = vmatpush.bf16.msra.mxu0 %v404
    %516 = vmatpush.bf16.msra.mxu0 %v402
    %517 = vmatpush.bf16.msra.mxu0 %v400
    %518 = vmatpush.bf16.msra.mxu0 %v398
    %519 = vmatpush.bf16.msra.mxu0 %v396
    %520 = vmatpush.bf16.msra.mxu0 %v394
    %521 = vmatmul.bf16.gmra.mxu0 %v149
    %v522 = vpop.f32.mrf.mxu0
    %v523 = vadd.f32 %v510, %v522
    %v524 = vpop.f32.mrf.mxu0
    %525 = vdwg.mxu0
    %526 = vmatpush.bf16.msra.mxu0 %v361
    %527 = vmatpush.bf16.msra.mxu0 %v359
    %528 = vmatpush.bf16.msra.mxu0 %v357
    %529 = vmatpush.bf16.msra.mxu0 %v355
    %530 = vmatpush.bf16.msra.mxu0 %v353
    %531 = vmatpush.bf16.msra.mxu0 %v351
    %532 = vmatpush.bf16.msra.mxu0 %v349
    %533 = vmatpush.bf16.msra.mxu0 %v347
    %534 = vmatmul.bf16.gmra.mxu0 %v146
    %v535 = vpop.f32.mrf.mxu0
    %v536 = vadd.f32 %v141, %v535
    %v537 = vpop.f32.mrf.mxu0
    %538 = vdwg.mxu0
    %539 = vmatpush.bf16.msra.mxu0 %v377
    %540 = vmatpush.bf16.msra.mxu0 %v375
    %541 = vmatpush.bf16.msra.mxu0 %v373
    %542 = vmatpush.bf16.msra.mxu0 %v371
    %543 = vmatpush.bf16.msra.mxu0 %v369
    %544 = vmatpush.bf16.msra.mxu0 %v367
    %545 = vmatpush.bf16.msra.mxu0 %v365
    %546 = vmatpush.bf16.msra.mxu0 %v363
    %547 = vmatmul.bf16.gmra.mxu0 %v147
    %v548 = vpop.f32.mrf.mxu0
    %v549 = vadd.f32 %v536, %v548
    %v550 = vpop.f32.mrf.mxu0
    %551 = vdwg.mxu0
    %552 = vmatpush.bf16.msra.mxu0 %v393
    %553 = vmatpush.bf16.msra.mxu0 %v391
    %554 = vmatpush.bf16.msra.mxu0 %v389
    %555 = vmatpush.bf16.msra.mxu0 %v387
    %556 = vmatpush.bf16.msra.mxu0 %v385
    %557 = vmatpush.bf16.msra.mxu0 %v383
    %558 = vmatpush.bf16.msra.mxu0 %v381
    %559 = vmatpush.bf16.msra.mxu0 %v379
    %560 = vmatmul.bf16.gmra.mxu0 %v148
    %v561 = vpop.f32.mrf.mxu0
    %v562 = vadd.f32 %v549, %v561
    %v563 = vpop.f32.mrf.mxu0
    %564 = vdwg.mxu0
    %565 = vmatpush.bf16.msra.mxu0 %v409
    %566 = vmatpush.bf16.msra.mxu0 %v407
    %567 = vmatpush.bf16.msra.mxu0 %v405
    %568 = vmatpush.bf16.msra.mxu0 %v403
    %569 = vmatpush.bf16.msra.mxu0 %v401
    %570 = vmatpush.bf16.msra.mxu0 %v399
    %571 = vmatpush.bf16.msra.mxu0 %v397
    %572 = vmatpush.bf16.msra.mxu0 %v395
    %573 = vmatmul.bf16.gmra.mxu0 %v149
    %v574 = vpop.f32.mrf.mxu0
    %v575 = vadd.f32 %v562, %v574
    %v576 = vpop.f32.mrf.mxu0
    %577 = vdwg.mxu0
    %v578 = vmax.f32 %v523, 0.0
    %v579 = vmax.f32 %v575, 0.0
    %v580 = vld [vmem:[%s4] sm:$0xff]
    %v581 = vld [vmem:[%s4 + $0x8] sm:$0xff]
    %v582 = vld [vmem:[%s4 + $0x10] sm:$0xff]
    %v583 = vld [vmem:[%s4 + $0x18] sm:$0xff]
    %v584 = vld [vmem:[%s4 + $0x20] sm:$0xff]
    %v585 = vld [vmem:[%s4 + $0x28] sm:$0xff]
    %v586 = vld [vmem:[%s4 + $0x30] sm:$0xff]
    %v587 = vld [vmem:[%s4 + $0x38] sm:$0xff]
    %v588 = vld [vmem:[%s4 + $0x40] sm:$0xff]
    %v589 = vld [vmem:[%s4 + $0x48] sm:$0xff]
    %v590 = vld [vmem:[%s4 + $0x50] sm:$0xff]
    %v591 = vld [vmem:[%s4 + $0x58] sm:$0xff]
    %v592 = vld [vmem:[%s4 + $0x60] sm:$0xff]
    %v593 = vld [vmem:[%s4 + $0x68] sm:$0xff]
    %v594 = vld [vmem:[%s4 + $0x70] sm:$0xff]
    %v595 = vld [vmem:[%s4 + $0x78] sm:$0xff]
    %v596 = vld [vmem:[%s4 + $0x80] sm:$0xff]
    %v597 = vld [vmem:[%s4 + $0x88] sm:$0xff]
    %v598 = vld [vmem:[%s4 + $0x90] sm:$0xff]
    %v599 = vld [vmem:[%s4 + $0x98] sm:$0xff]
    %v600 = vld [vmem:[%s4 + $0xa0] sm:$0xff]
    %v601 = vld [vmem:[%s4 + $0xa8] sm:$0xff]
    %v602 = vld [vmem:[%s4 + $0xb0] sm:$0xff]
    %v603 = vld [vmem:[%s4 + $0xb8] sm:$0xff]
    %v604 = vld [vmem:[%s4 + $0xc0] sm:$0xff]
    %v605 = vld [vmem:[%s4 + $0xc8] sm:$0xff]
    %v606 = vld [vmem:[%s4 + $0xd0] sm:$0xff]
    %v607 = vld [vmem:[%s4 + $0xd8] sm:$0xff]
    %v608 = vld [vmem:[%s4 + $0xe0] sm:$0xff]
    %v609 = vld [vmem:[%s4 + $0xe8] sm:$0xff]
    %v610 = vld [vmem:[%s4 + $0xf0] sm:$0xff]
    %v611 = vld [vmem:[%s4 + $0xf8] sm:$0xff]
    %v612 = vld [vmem:[#allocation2] sm:$0x1]
    %v614 = vperm.slane %v612, 0
    %615 = vset.pattern.permute.xlu0 0
    %616 = vperm.xlu0 %615, %v614
    %v617 = vpop.permute.xlu0 %616
    %619 = vmatpush.msra.mxu0 %v595
    %620 = vmatpush.msra.mxu0 %v594
    %621 = vmatpush.msra.mxu0 %v593
    %622 = vmatpush.msra.mxu0 %v592
    %623 = vmatpush.msra.mxu0 %v591
    %624 = vmatpush.msra.mxu0 %v590
    %625 = vmatpush.msra.mxu0 %v589
    %626 = vmatpush.msra.mxu0 %v588
    %627 = vmatpush.msra.mxu0 %v587
    %628 = vmatpush.msra.mxu0 %v586
    %629 = vmatpush.msra.mxu0 %v585
    %630 = vmatpush.msra.mxu0 %v584
    %631 = vmatpush.msra.mxu0 %v583
    %632 = vmatpush.msra.mxu0 %v582
    %633 = vmatpush.msra.mxu0 %v581
    %634 = vmatpush.msra.mxu0 %v580
    %635 = vmatmul.f32.gmra.mxu0 %v578
    %v636 = vpop.f32.mrf.mxu0
    %v637 = vadd.f32 %v617, %v636
    %638 = vdwg.mxu0
    %639 = vmatpush.msra.mxu0 %v611
    %640 = vmatpush.msra.mxu0 %v610
    %641 = vmatpush.msra.mxu0 %v609
    %642 = vmatpush.msra.mxu0 %v608
    %643 = vmatpush.msra.mxu0 %v607
    %644 = vmatpush.msra.mxu0 %v606
    %645 = vmatpush.msra.mxu0 %v605
    %646 = vmatpush.msra.mxu0 %v604
    %647 = vmatpush.msra.mxu0 %v603
    %648 = vmatpush.msra.mxu0 %v602
    %649 = vmatpush.msra.mxu0 %v601
    %650 = vmatpush.msra.mxu0 %v600
    %651 = vmatpush.msra.mxu0 %v599
    %652 = vmatpush.msra.mxu0 %v598
    %653 = vmatpush.msra.mxu0 %v597
    %654 = vmatpush.msra.mxu0 %v596
    %655 = vmatmul.f32.gmra.mxu0 %v579
    %v656 = vpop.f32.mrf.mxu0
    %v657 = vadd.f32 %v637, %v656
    %658 = vdwg.mxu0
    %vm659 = vcmask 123904
    %v660 = vsel %vm659, %v657, -inf
    %661 = vmax.xlane.f32.xlu0 %v660
    %v662 = vpop.xlane.xlu0 %661
    %v663 = vsub.f32 %v657, %v662
    %v664 = vmul.f32 %v663, 1.442695
    %v665 = vpow.pop %v664
    %v666 = vld [vmem:[%s6] sm:$0xff]
    %v667 = vld [vmem:[%s6 + $0x8] sm:$0xff]
    %vm668 = vcmask 130048
    %v670 = vsel %vm668, %v665, 0
    %672 = vmatpush.msra.mxu0 0.0
    %673 = vmatpush.msra.mxu0 0.0
    %674 = vmatpush.msra.mxu0 0.0
    %675 = vmatpush.msra.mxu0 0.0
    %676 = vmatpush.msra.mxu0 0.0
    %677 = vmatpush.msra.mxu0 0.0
    %678 = vmatpush.msra.mxu0 0.0
    %679 = vmatpush.msra.mxu0 0.0
    %680 = vmatpush.msra.mxu0 0.0
    %681 = vmatpush.msra.mxu0 0.0
    %682 = vmatpush.msra.mxu0 0.0
    %683 = vmatpush.msra.mxu0 0.0
    %684 = vmatpush.msra.mxu0 0.0
    %685 = vmatpush.msra.mxu0 0.0
    %686 = vmatpush.msra.mxu0 %v667
    %687 = vmatpush.msra.mxu0 %v666
    %688 = vmatmul.f32.gmra.mxu0 %v670
    %v689 = vpop.f32.mrf.mxu0
    %v690 = vadd.f32 0.0, %v689
    %691 = vdwg.mxu0
    %v692 = vrcp.pop %v690
    %v693 = vmul.f32 %v690, %v692
    %v694 = vsub.f32 1.0, %v693
    %v695 = vmul.f32 %v692, %v694
    %v696 = vadd.f32 %v692, %v695
    %vm697 = vweird.f32 %v690
    %vm698 = vweird.f32 %v692
    %vm699 = vmor %vm697, %vm698
    %v700 = vsel %vm699, %v692, %v696
    %v701 = vand.u32 2147483647, %v690
    %vm702 = vcmp.eq.f32.partialorder %v701, 8.507059e+37
    %v703 = vand.u32 %v690, 2147483648
    %v704 = vor.u32 1.1754944e-38, %v703
    %v705 = vsel %vm702, %v704, %v700
    %v706 = vmul.f32 %v665, %v705
    %v707 = vld [vmem:[%s7] sm:$0xff]
    %v708 = vld [vmem:[%s7 + $0x8] sm:$0xff]
    %v709 = vld [vmem:[%s7 + $0x10] sm:$0xff]
    %v710 = vld [vmem:[%s7 + $0x18] sm:$0xff]
    %v711 = vld [vmem:[%s7 + $0x20] sm:$0xff]
    %v712 = vld [vmem:[%s7 + $0x28] sm:$0xff]
    %v713 = vld [vmem:[%s7 + $0x30] sm:$0xff]
    %v714 = vld [vmem:[%s7 + $0x38] sm:$0xff]
    %v716 = vsel %vm668, %v706, 0
    %718 = vmatpush.msra.mxu0 0.0
    %719 = vmatpush.msra.mxu0 0.0
    %720 = vmatpush.msra.mxu0 0.0
    %721 = vmatpush.msra.mxu0 0.0
    %722 = vmatpush.msra.mxu0 0.0
    %723 = vmatpush.msra.mxu0 0.0
    %724 = vmatpush.msra.mxu0 0.0
    %725 = vmatpush.msra.mxu0 0.0
    %726 = vmatpush.msra.mxu0 0.0
    %727 = vmatpush.msra.mxu0 0.0
    %728 = vmatpush.msra.mxu0 0.0
    %729 = vmatpush.msra.mxu0 0.0
    %730 = vmatpush.msra.mxu0 0.0
    %731 = vmatpush.msra.mxu0 0.0
    %732 = vmatpush.msra.mxu0 %v711
    %733 = vmatpush.msra.mxu0 %v707
    %734 = vmatmul.f32.gmra.mxu0 %v716
    %v735 = vpop.f32.mrf.mxu0
    %v736 = vadd.f32 0.0, %v735
    %737 = vdwg.mxu0
    %738 = vmatpush.msra.mxu0 0.0
    %739 = vmatpush.msra.mxu0 0.0
    %740 = vmatpush.msra.mxu0 0.0
    %741 = vmatpush.msra.mxu0 0.0
    %742 = vmatpush.msra.mxu0 0.0
    %743 = vmatpush.msra.mxu0 0.0
    %744 = vmatpush.msra.mxu0 0.0
    %745 = vmatpush.msra.mxu0 0.0
    %746 = vmatpush.msra.mxu0 0.0
    %747 = vmatpush.msra.mxu0 0.0
    %748 = vmatpush.msra.mxu0 0.0
    %749 = vmatpush.msra.mxu0 0.0
    %750 = vmatpush.msra.mxu0 0.0
    %751 = vmatpush.msra.mxu0 0.0
    %752 = vmatpush.msra.mxu0 %v712
    %753 = vmatpush.msra.mxu0 %v708
    %754 = vmatmul.f32.gmra.mxu0 %v716
    %v755 = vpop.f32.mrf.mxu0
    %v756 = vadd.f32 0.0, %v755
    %757 = vdwg.mxu0
    %758 = vmatpush.msra.mxu0 0.0
    %759 = vmatpush.msra.mxu0 0.0
    %760 = vmatpush.msra.mxu0 0.0
    %761 = vmatpush.msra.mxu0 0.0
    %762 = vmatpush.msra.mxu0 0.0
    %763 = vmatpush.msra.mxu0 0.0
    %764 = vmatpush.msra.mxu0 0.0
    %765 = vmatpush.msra.mxu0 0.0
    %766 = vmatpush.msra.mxu0 0.0
    %767 = vmatpush.msra.mxu0 0.0
    %768 = vmatpush.msra.mxu0 0.0
    %769 = vmatpush.msra.mxu0 0.0
    %770 = vmatpush.msra.mxu0 0.0
    %771 = vmatpush.msra.mxu0 0.0
    %772 = vmatpush.msra.mxu0 %v713
    %773 = vmatpush.msra.mxu0 %v709
    %774 = vmatmul.f32.gmra.mxu0 %v716
    %v775 = vpop.f32.mrf.mxu0
    %v776 = vadd.f32 0.0, %v775
    %777 = vdwg.mxu0
    %778 = vmatpush.msra.mxu0 0.0
    %779 = vmatpush.msra.mxu0 0.0
    %780 = vmatpush.msra.mxu0 0.0
    %781 = vmatpush.msra.mxu0 0.0
    %782 = vmatpush.msra.mxu0 0.0
    %783 = vmatpush.msra.mxu0 0.0
    %784 = vmatpush.msra.mxu0 0.0
    %785 = vmatpush.msra.mxu0 0.0
    %786 = vmatpush.msra.mxu0 0.0
    %787 = vmatpush.msra.mxu0 0.0
    %788 = vmatpush.msra.mxu0 0.0
    %789 = vmatpush.msra.mxu0 0.0
    %790 = vmatpush.msra.mxu0 0.0
    %791 = vmatpush.msra.mxu0 0.0
    %792 = vmatpush.msra.mxu0 %v714
    %793 = vmatpush.msra.mxu0 %v710
    %794 = vmatmul.f32.gmra.mxu0 %v716
    %v795 = vpop.f32.mrf.mxu0
    %v796 = vadd.f32 0.0, %v795
    %797 = vdwg.mxu0
    %v798 = vunpack.c.l.bf16 %v73
    %800 = vst [vmem:[#allocation1] ss:$4 sm:$0xff] %v798
    %v801 = vld.sshfl [vmem:[#allocation1] sm:$0xff pattern:$0x73625140]
    %v802 = vld.sshfl [vmem:[#allocation1 + $0x8] sm:$0xff pattern:$0x73625140]
    %v803 = vld.sshfl [vmem:[#allocation1 + $0x10] sm:$0xff pattern:$0x73625140]
    %v804 = vld.sshfl [vmem:[#allocation1 + $0x18] sm:$0xff pattern:$0x73625140]
    %v809 = vmul.f32 %v736, %v801
    %v810 = vmul.f32 %v756, %v802
    %v811 = vmul.f32 %v776, %v803
    %v812 = vmul.f32 %v796, %v804
    %v813 = vld [vmem:[#allocation6] sm:$0xff]
    %v814 = vld [vmem:[#allocation6 + $0x8] sm:$0xff]
    %v815 = vld [vmem:[#allocation6 + $0x10] sm:$0xff]
    %v816 = vld [vmem:[#allocation6 + $0x18] sm:$0xff]
    %v817 = vld [vmem:[#allocation6 + $0x20] sm:$0xff]
    %v818 = vld [vmem:[#allocation6 + $0x28] sm:$0xff]
    %v819 = vld [vmem:[#allocation6 + $0x30] sm:$0xff]
    %v820 = vld [vmem:[#allocation6 + $0x38] sm:$0xff]
    %v821 = vld [vmem:[#allocation6 + $0x40] sm:$0xff]
    %v822 = vld [vmem:[#allocation6 + $0x48] sm:$0xff]
    %v823 = vld [vmem:[#allocation6 + $0x50] sm:$0xff]
    %v824 = vld [vmem:[#allocation6 + $0x58] sm:$0xff]
    %v825 = vld [vmem:[#allocation6 + $0x60] sm:$0xff]
    %v826 = vld [vmem:[#allocation6 + $0x68] sm:$0xff]
    %v827 = vld [vmem:[#allocation6 + $0x70] sm:$0xff]
    %v828 = vld [vmem:[#allocation6 + $0x78] sm:$0xff]
    %v829 = vld [vmem:[#allocation6 + $0x80] sm:$0xff]
    %v830 = vld [vmem:[#allocation6 + $0x88] sm:$0xff]
    %v831 = vld [vmem:[#allocation6 + $0x90] sm:$0xff]
    %v832 = vld [vmem:[#allocation6 + $0x98] sm:$0xff]
    %v833 = vld [vmem:[#allocation6 + $0xa0] sm:$0xff]
    %v834 = vld [vmem:[#allocation6 + $0xa8] sm:$0xff]
    %v835 = vld [vmem:[#allocation6 + $0xb0] sm:$0xff]
    %v836 = vld [vmem:[#allocation6 + $0xb8] sm:$0xff]
    %v837 = vld [vmem:[#allocation6 + $0xc0] sm:$0xff]
    %v838 = vld [vmem:[#allocation6 + $0xc8] sm:$0xff]
    %v839 = vld [vmem:[#allocation6 + $0xd0] sm:$0xff]
    %v840 = vld [vmem:[#allocation6 + $0xd8] sm:$0xff]
    %v841 = vld [vmem:[#allocation6 + $0xe0] sm:$0xff]
    %v842 = vld [vmem:[#allocation6 + $0xe8] sm:$0xff]
    %v843 = vld [vmem:[#allocation6 + $0xf0] sm:$0xff]
    %v844 = vld [vmem:[#allocation6 + $0xf8] sm:$0xff]
    %v845 = vld [vmem:[#allocation6 + $0x100] sm:$0xff]
    %v846 = vld [vmem:[#allocation6 + $0x108] sm:$0xff]
    %v847 = vld [vmem:[#allocation6 + $0x110] sm:$0xff]
    %v848 = vld [vmem:[#allocation6 + $0x118] sm:$0xff]
    %v849 = vld [vmem:[#allocation6 + $0x120] sm:$0xff]
    %v850 = vld [vmem:[#allocation6 + $0x128] sm:$0xff]
    %v851 = vld [vmem:[#allocation6 + $0x130] sm:$0xff]
    %v852 = vld [vmem:[#allocation6 + $0x138] sm:$0xff]
    %v853 = vld [vmem:[#allocation6 + $0x140] sm:$0xff]
    %v854 = vld [vmem:[#allocation6 + $0x148] sm:$0xff]
    %v855 = vld [vmem:[#allocation6 + $0x150] sm:$0xff]
    %v856 = vld [vmem:[#allocation6 + $0x158] sm:$0xff]
    %v857 = vld [vmem:[#allocation6 + $0x160] sm:$0xff]
    %v858 = vld [vmem:[#allocation6 + $0x168] sm:$0xff]
    %v859 = vld [vmem:[#allocation6 + $0x170] sm:$0xff]
    %v860 = vld [vmem:[#allocation6 + $0x178] sm:$0xff]
    %v861 = vld [vmem:[#allocation6 + $0x180] sm:$0xff]
    %v862 = vld [vmem:[#allocation6 + $0x188] sm:$0xff]
    %v863 = vld [vmem:[#allocation6 + $0x190] sm:$0xff]
    %v864 = vld [vmem:[#allocation6 + $0x198] sm:$0xff]
    %v865 = vld [vmem:[#allocation6 + $0x1a0] sm:$0xff]
    %v866 = vld [vmem:[#allocation6 + $0x1a8] sm:$0xff]
    %v867 = vld [vmem:[#allocation6 + $0x1b0] sm:$0xff]
    %v868 = vld [vmem:[#allocation6 + $0x1b8] sm:$0xff]
    %v869 = vld [vmem:[#allocation6 + $0x1c0] sm:$0xff]
    %v870 = vld [vmem:[#allocation6 + $0x1c8] sm:$0xff]
    %v871 = vld [vmem:[#allocation6 + $0x1d0] sm:$0xff]
    %v872 = vld [vmem:[#allocation6 + $0x1d8] sm:$0xff]
    %v873 = vld [vmem:[#allocation6 + $0x1e0] sm:$0xff]
    %v874 = vld [vmem:[#allocation6 + $0x1e8] sm:$0xff]
    %v875 = vld [vmem:[#allocation6 + $0x1f0] sm:$0xff]
    %v876 = vld [vmem:[#allocation6 + $0x1f8] sm:$0xff]
    %v877 = vld [vmem:[%s1] sm:$0x1]
    %v878 = vld [vmem:[%s9] sm:$0xf]
    %v879 = vld [vmem:[%s9 + $0x4] sm:$0xf]
    %v880 = vld [vmem:[%s9 + $0x8] sm:$0xf]
    %v881 = vld [vmem:[%s9 + $0xc] sm:$0xf]
    %v882 = vld [vmem:[%s9 + $0x10] sm:$0xf]
    %v883 = vld [vmem:[%s9 + $0x14] sm:$0xf]
    %v884 = vld [vmem:[%s9 + $0x18] sm:$0xf]
    %v885 = vld [vmem:[%s9 + $0x1c] sm:$0xf]
    %v886 = vld [vmem:[%s9 + $0x20] sm:$0xf]
    %v887 = vld [vmem:[%s9 + $0x24] sm:$0xf]
    %v888 = vld [vmem:[%s9 + $0x28] sm:$0xf]
    %v889 = vld [vmem:[%s9 + $0x2c] sm:$0xf]
    %v890 = vld [vmem:[%s9 + $0x30] sm:$0xf]
    %v891 = vld [vmem:[%s9 + $0x34] sm:$0xf]
    %v892 = vld [vmem:[%s9 + $0x38] sm:$0xf]
    %v893 = vld [vmem:[%s9 + $0x3c] sm:$0xf]
    %v910 = vunpack.c.l.b16 %v878
    %v911 = vunpack.c.l.b16 %v879
    %v912 = vunpack.c.l.b16 %v880
    %v913 = vunpack.c.l.b16 %v881
    %v914 = vunpack.c.l.b16 %v882
    %v915 = vunpack.c.l.b16 %v883
    %v916 = vunpack.c.l.b16 %v884
    %v917 = vunpack.c.l.b16 %v885
    %v918 = vunpack.c.l.b16 %v886
    %v919 = vunpack.c.l.b16 %v887
    %v920 = vunpack.c.l.b16 %v888
    %v921 = vunpack.c.l.b16 %v889
    %v922 = vunpack.c.l.b16 %v890
    %v923 = vunpack.c.l.b16 %v891
    %v924 = vunpack.c.l.b16 %v892
    %v925 = vunpack.c.l.b16 %v893
    %v926 = vpack.c.b16 %v911, %v910
    %v927 = vpack.c.b16 %v913, %v912
    %v928 = vpack.c.b16 %v915, %v914
    %v929 = vpack.c.b16 %v917, %v916
    %v930 = vpack.c.b16 %v919, %v918
    %v931 = vpack.c.b16 %v921, %v920
    %v932 = vpack.c.b16 %v923, %v922
    %v933 = vpack.c.b16 %v925, %v924
    %942 = vmatpush.bf16.msra.mxu0 %v933
    %943 = vmatpush.bf16.msra.mxu0 %v932
    %944 = vmatpush.bf16.msra.mxu0 %v931
    %945 = vmatpush.bf16.msra.mxu0 %v930
    %946 = vmatpush.bf16.msra.mxu0 %v929
    %947 = vmatpush.bf16.msra.mxu0 %v928
    %948 = vmatpush.bf16.msra.mxu0 %v927
    %949 = vmatpush.bf16.msra.mxu0 %v926
    %950 = vmatmul.bf16.gmra.mxu0 %v877
    %v951 = vpop.f32.mrf.mxu0
    %v952 = vadd.f32 0.0, %v951
    %v953 = vpop.f32.mrf.mxu0
    %954 = vdwg.mxu0
    %955 = vmatpush.msra.mxu0 %v828
    %956 = vmatpush.msra.mxu0 %v827
    %957 = vmatpush.msra.mxu0 %v826
    %958 = vmatpush.msra.mxu0 %v825
    %959 = vmatpush.msra.mxu0 %v824
    %960 = vmatpush.msra.mxu0 %v823
    %961 = vmatpush.msra.mxu0 %v822
    %962 = vmatpush.msra.mxu0 %v821
    %963 = vmatpush.msra.mxu0 %v820
    %964 = vmatpush.msra.mxu0 %v819
    %965 = vmatpush.msra.mxu0 %v818
    %966 = vmatpush.msra.mxu0 %v817
    %967 = vmatpush.msra.mxu0 %v816
    %968 = vmatpush.msra.mxu0 %v815
    %969 = vmatpush.msra.mxu0 %v814
    %970 = vmatpush.msra.mxu0 %v813
    %971 = vmatmul.f32.gmra.mxu0 %v809
    %v972 = vpop.f32.mrf.mxu0
    %v973 = vadd.f32 %v952, %v972
    %974 = vdwg.mxu0
    %975 = vmatpush.msra.mxu0 %v844
    %976 = vmatpush.msra.mxu0 %v843
    %977 = vmatpush.msra.mxu0 %v842
    %978 = vmatpush.msra.mxu0 %v841
    %979 = vmatpush.msra.mxu0 %v840
    %980 = vmatpush.msra.mxu0 %v839
    %981 = vmatpush.msra.mxu0 %v838
    %982 = vmatpush.msra.mxu0 %v837
    %983 = vmatpush.msra.mxu0 %v836
    %984 = vmatpush.msra.mxu0 %v835
    %985 = vmatpush.msra.mxu0 %v834
    %986 = vmatpush.msra.mxu0 %v833
    %987 = vmatpush.msra.mxu0 %v832
    %988 = vmatpush.msra.mxu0 %v831
    %989 = vmatpush.msra.mxu0 %v830
    %990 = vmatpush.msra.mxu0 %v829
    %991 = vmatmul.f32.gmra.mxu0 %v810
    %v992 = vpop.f32.mrf.mxu0
    %v993 = vadd.f32 %v973, %v992
    %994 = vdwg.mxu0
    %995 = vmatpush.msra.mxu0 %v860
    %996 = vmatpush.msra.mxu0 %v859
    %997 = vmatpush.msra.mxu0 %v858
    %998 = vmatpush.msra.mxu0 %v857
    %999 = vmatpush.msra.mxu0 %v856
    %1000 = vmatpush.msra.mxu0 %v855
    %1001 = vmatpush.msra.mxu0 %v854
    %1002 = vmatpush.msra.mxu0 %v853
    %1003 = vmatpush.msra.mxu0 %v852
    %1004 = vmatpush.msra.mxu0 %v851
    %1005 = vmatpush.msra.mxu0 %v850
    %1006 = vmatpush.msra.mxu0 %v849
    %1007 = vmatpush.msra.mxu0 %v848
    %1008 = vmatpush.msra.mxu0 %v847
    %1009 = vmatpush.msra.mxu0 %v846
    %1010 = vmatpush.msra.mxu0 %v845
    %1011 = vmatmul.f32.gmra.mxu0 %v811
    %v1012 = vpop.f32.mrf.mxu0
    %v1013 = vadd.f32 %v993, %v1012
    %1014 = vdwg.mxu0
    %1015 = vmatpush.msra.mxu0 %v876
    %1016 = vmatpush.msra.mxu0 %v875
    %1017 = vmatpush.msra.mxu0 %v874
    %1018 = vmatpush.msra.mxu0 %v873
    %1019 = vmatpush.msra.mxu0 %v872
    %1020 = vmatpush.msra.mxu0 %v871
    %1021 = vmatpush.msra.mxu0 %v870
    %1022 = vmatpush.msra.mxu0 %v869
    %1023 = vmatpush.msra.mxu0 %v868
    %1024 = vmatpush.msra.mxu0 %v867
    %1025 = vmatpush.msra.mxu0 %v866
    %1026 = vmatpush.msra.mxu0 %v865
    %1027 = vmatpush.msra.mxu0 %v864
    %1028 = vmatpush.msra.mxu0 %v863
    %1029 = vmatpush.msra.mxu0 %v862
    %1030 = vmatpush.msra.mxu0 %v861
    %1031 = vmatmul.f32.gmra.mxu0 %v812
    %v1032 = vpop.f32.mrf.mxu0
    %v1033 = vadd.f32 %v1013, %v1032
    %1034 = vdwg.mxu0
    %v1035 = vld [vmem:[%s10] sm:$0x1]
    %v1037 = vperm.slane %v1035, 0
    %v1039 = vadd.f32 %v1033, %v1037
    %v1040 = vmax.f32 %v1039, 0.0
    %1041 = vst [vmem:[#allocation8] sm:$0x3] %v1040
    // Predicated region
    $region54: #{tpu_custom_call.1} parent=1 // pred_check
      _
    $region55: #{tpu_custom_call.1} parent=1 // pred_check_branch
      %1043 = sbr.rel (0) target = $region57
    $region56: #{tpu_custom_call.1} parent=1 // pred_region
      %1045 = vsyncadd [#allocation5], 0
      %s1047 = sshll.u32 [#allocation8], 4
      %s1048 = int_to_ptr.vmem [resolvable:$true] %s1047
      %s1049 = sshll.u32 %s11, 4
      %s1050 = int_to_ptr.hbm [resolvable:$true] %s1049
      %1052 = dma.vmem_to_hbm [thread:$0]  %s1048, 32, %s1050, [#allocation5]
    $region57: #{tpu_custom_call.1} parent=1 // pred_fallthru
      _
    // Predicated region
    $region58: #{tpu_custom_call.1} parent=1 // pred_check
      _
    $region59: #{tpu_custom_call.1} parent=1 // pred_check_branch
      %1054 = sbr.rel (0) target = $region61
    $region60: #{tpu_custom_call.1} parent=1 // pred_region
      %1056 = dma.done [#allocation5], 32
    $region61: #{tpu_custom_call.1} parent=1 // pred_fallthru
      _
    %1057 = vsyncpa [#allocation4], 1
    %1058 = vsyncpa [#allocation7], 1
    %1059 = vsyncpa [#allocation5], 1

</llo_original>
